<compile_context>
chip_gen: v7x
topology: tpu7x:2x2x1
jax: 0.10.0
libtpu: 0.0.40
codegen_flags: <defaults>
</compile_context>

<pallas_src>
import functools

import jax
import jax.numpy as jnp
import numpy as np
from jax.experimental import pallas as pl
from jax.experimental.pallas import tpu as pltpu


# ---------------------------------------------------------------------------
# Stage 1: row-tiled projection
#   h   = x @ W            (bf16 operands, f32 accumulate, bf16 out)
#   f12 = x @ (W @ [a1|a2]) (f32, feeds the softmax logits)
# ---------------------------------------------------------------------------
def _project_kernel(x_ref, w_ref, wa_ref, h_ref, f12_ref):
    x = x_ref[0]                                           # [tm, F_in] f32
    h = jnp.dot(x.astype(jnp.bfloat16), w_ref[...],
                preferred_element_type=jnp.float32)        # [tm, F_out]
    h_ref[0] = h.astype(jnp.bfloat16)
    f12_ref[0] = jnp.dot(x, wa_ref[...],
                         preferred_element_type=jnp.float32)  # [tm, 2]


# ---------------------------------------------------------------------------
# Stage 2: tiled masked softmax attention with online (flash-style) softmax.
# grid = (B, num_q_tiles, num_k_tiles); k axis is the reduction (innermost).
# ---------------------------------------------------------------------------
def _attn_kernel(f1_ref, f2t_ref, adj_ref, h_ref, out_ref,
                 m_sc, l_sc, acc_sc, *, alpha, tk, resident_h, exp_dtype):
    ki = pl.program_id(2)
    nk = pl.num_programs(2)

    @pl.when(ki == 0)
    def _():
        m_sc[...] = jnp.full_like(m_sc, -jnp.inf)
        l_sc[...] = jnp.zeros_like(l_sc)
        acc_sc[...] = jnp.zeros_like(acc_sc)

    f1 = f1_ref[0]                                   # [tq, 1]  f32
    f2 = f2t_ref[0]                                  # [1, tk]  f32
    e = f1 + f2                                      # [tq, tk] broadcast
    if 0.0 <= alpha <= 1.0:
        e = jnp.maximum(e, alpha * e)                # LeakyReLU (1 VALU op)
    else:
        e = jnp.where(e > 0, e, alpha * e)
    e = jnp.where(adj_ref[0] != 0, e, -9e15)         # int8 adjacency, no unpack

    m_prev = m_sc[...]
    m_new = jnp.maximum(m_prev, jnp.max(e, axis=-1, keepdims=True))   # [tq, 1]
    corr = jnp.exp(m_prev - m_new)
    # exp / p in bf16 on bf16-capable VPUs (v6e/v7x), f32 elsewhere (v5e).
    p = jnp.exp((e - m_new).astype(exp_dtype))                        # [tq, tk]
    l_sc[...] = corr * l_sc[...] + jnp.sum(
        p.astype(jnp.float32), axis=-1, keepdims=True)

    if resident_h:
        koff = pl.multiple_of(ki * tk, tk)
        h_blk = h_ref[0, pl.ds(koff, tk), :]         # [tk, F_out] bf16 slice
    else:
        h_blk = h_ref[0]                             # streamed block
    # Dominant matmul in bf16 (f32 accumulation) -> full-rate MXU path.
    acc_sc[...] = corr * acc_sc[...] + jnp.dot(
        p.astype(jnp.bfloat16), h_blk, preferred_element_type=jnp.float32)
    m_sc[...] = m_new

    @pl.when(ki == nk - 1)
    def _():
        hp = acc_sc[...] * pl.reciprocal(l_sc[...], approx=True)
        # ELU (concat=True); clamp before exp so the dead branch can't hit inf.
        out_ref[0] = jnp.where(hp > 0, hp, jnp.exp(jnp.minimum(hp, 0.0)) - 1.0)


def _round_up(x, m):
    return (x + m - 1) // m * m


def gat_forward(x, adj, W, a, *, alpha, max_tile=512):
    """Forward of GraphAttentionLayerBatch (eval mode, concat=True)."""
    B, N, F_in = x.shape
    F_out = W.shape[1]

    # ---- host-side prep (cheap XLA ops) -----------------------------------
    a1 = a[:F_out, :]                                   # [F_out, 1]
    a2 = a[F_out:, :]                                   # [F_out, 1]
    wa = jnp.concatenate([W @ a1, W @ a2], axis=1).astype(jnp.float32)  # [F_in, 2]
    w_bf16 = W.astype(jnp.bfloat16)

    # Tile sizes / padding: lane-dense tiles, grid divides evenly.
    if N <= max_tile:
        tile = min(_round_up(max(N, 1), 128), max_tile)   # single tile (128..512)
    else:
        tile = max_tile                                   # 512 tiles for big graphs
    Np = _round_up(N, tile)
    tq = tk = tile
    nq = Np // tq
    nk = Np // tk

    x_p = x.astype(jnp.float32)
    adj_mask = (adj > 0).astype(jnp.int8)               # 4x less HBM traffic
    if Np != N:
        x_p = jnp.pad(x_p, ((0, 0), (0, Np - N), (0, 0)))
        adj_mask = jnp.pad(adj_mask, ((0, 0), (0, Np - N), (0, Np - N)))

    # bf16 exp/p tail only where the VPU/EUP have a native bf16 path.
    kind = jax.devices()[0].device_kind.lower()
    exp_dtype = jnp.bfloat16 if ("v6" in kind or "v7" in kind) else jnp.float32

    # ---- stage 1: row-tiled projection -------------------------------------
    tm = Np if Np <= 512 else 512                       # Np is a multiple of 512 then
    h, f12 = pl.pallas_call(
        _project_kernel,
        out_shape=(jax.ShapeDtypeStruct((B, Np, F_out), jnp.bfloat16),
                   jax.ShapeDtypeStruct((B, Np, 2), jnp.float32)),
        grid_spec=pltpu.PrefetchScalarGridSpec(
            num_scalar_prefetch=0,
            grid=(B, Np // tm),
            in_specs=[
                pl.BlockSpec((1, tm, F_in), lambda b, i: (b, i, 0)),
                pl.BlockSpec((F_in, F_out), lambda b, i: (0, 0)),   # resident
                pl.BlockSpec((F_in, 2), lambda b, i: (0, 0)),       # resident
            ],
            out_specs=[
                pl.BlockSpec((1, tm, F_out), lambda b, i: (b, i, 0)),
                pl.BlockSpec((1, tm, 2), lambda b, i: (b, i, 0)),
            ],
        ),
        compiler_params=pltpu.CompilerParams(
            dimension_semantics=("parallel", "parallel"),
            vmem_limit_bytes=32 * 1024 * 1024),
    )(x_p, w_bf16, wa)

    f1 = f12[:, :, 0:1]                                 # [B, Np, 1]
    f2t = f12[:, :, 1].reshape(B, 1, Np)                # [B, 1, Np]

    # ---- stage 2: tiled masked softmax attention ----------------------------
    # h residency per batch element (cuts h HBM traffic by nq x); fall back to
    # streaming h blocks if the resident copy would not comfortably fit VMEM.
    resident_h = (2 * Np * F_out * 2) <= (8 << 20)
    if resident_h:
        h_spec = pl.BlockSpec((1, Np, F_out), lambda b, qi, ki: (b, 0, 0))
    else:
        h_spec = pl.BlockSpec((1, tk, F_out), lambda b, qi, ki: (b, ki, 0))

    vmem_need = (2 * tq * tk                                   # adj int8 (x2 buf)
                 + 2 * tq * 4 + 2 * tk * 4                     # f1, f2t
                 + (2 * Np * F_out * 2 if resident_h else 2 * tk * F_out * 2)
                 + 2 * tq * F_out * 4                          # out
                 + 2 * tq * 4 * 2 + tq * F_out * 4             # scratch
                 + 6 * tq * tk * 4)                            # e/p temporaries
    vmem_limit = int(min(max(2 * vmem_need, 32 << 20), 48 << 20))

    flops = 2 * B * Np * Np * F_out + 10 * B * Np * Np
    h_bytes = B * Np * F_out * 2 * (1 if resident_h else nq)
    bytes_accessed = (B * Np * Np                      # adj (int8)
                      + h_bytes                        # h (bf16)
                      + B * Np * F_out * 4             # output (f32)
                      + B * Np * 4 * (1 + nq))         # f2 stream + f1

    out = pl.pallas_call(
        functools.partial(_attn_kernel, alpha=alpha, tk=tk,
                          resident_h=resident_h, exp_dtype=exp_dtype),
        out_shape=jax.ShapeDtypeStruct((B, Np, F_out), jnp.float32),
        grid_spec=pltpu.PrefetchScalarGridSpec(
            num_scalar_prefetch=0,
            grid=(B, nq, nk),
            in_specs=[
                pl.BlockSpec((1, tq, 1), lambda b, qi, ki: (b, qi, 0)),
                pl.BlockSpec((1, 1, tk), lambda b, qi, ki: (b, 0, ki)),
                pl.BlockSpec((1, tq, tk), lambda b, qi, ki: (b, qi, ki)),
                h_spec,
            ],
            out_specs=pl.BlockSpec((1, tq, F_out), lambda b, qi, ki: (b, qi, 0)),
            scratch_shapes=[
                pltpu.VMEM((tq, 1), jnp.float32),       # running max
                pltpu.VMEM((tq, 1), jnp.float32),       # running sum
                pltpu.VMEM((tq, F_out), jnp.float32),   # running accumulator
            ],
        ),
        compiler_params=pltpu.CompilerParams(
            dimension_semantics=("parallel", "parallel", "arbitrary"),
            vmem_limit_bytes=vmem_limit),
        cost_estimate=pl.CostEstimate(
            flops=int(flops),
            transcendentals=int(B * Np * Np),
            bytes_accessed=int(bytes_accessed)),
    )(f1, f2t, adj_mask, h)

    if Np != N:
        out = out[:, :N, :]
    return out


# ---------------------------------------------------------------------------
# Reference + test
# ---------------------------------------------------------------------------
def _reference(x, adj, W, a, alpha):
    h = jnp.einsum("bnf,fo->bno", x, W)
    F_out = W.shape[1]
    a1, a2 = a[:F_out, 0], a[F_out:, 0]
    f1 = h @ a1                                          # [B, N]
    f2 = h @ a2                                          # [B, N]
    e = f1[:, :, None] + f2[:, None, :]
    e = jnp.where(e > 0, e, alpha * e)
    e = jnp.where(adj > 0, e, jnp.full_like(e, -9e15))
    attn = jax.nn.softmax(e, axis=2)
    hp = jnp.einsum("bij,bjo->bio", attn, h)
    return jnp.where(hp > 0, hp, jnp.exp(jnp.minimum(hp, 0.0)) - 1.0)


def _xavier_uniform(key, shape, gain):
    fan_in, fan_out = shape[0], shape[1]
    bound = gain * np.sqrt(6.0 / (fan_in + fan_out))
    return jax.random.uniform(key, shape, jnp.float32, -bound, bound)


def _make_case(key, B, N, F_in, F_out):
    k_x, k_adj, k_w, k_a = jax.random.split(key, 4)
    x = jax.random.normal(k_x, (B, N, F_in), jnp.float32)
    adj = (jax.random.uniform(k_adj, (B, N, N)) > 0.4).astype(jnp.float32)
    # Self-loops guarantee at least one edge per row (as in typical GAT use).
    adj = jnp.maximum(adj, jnp.eye(N, dtype=jnp.float32)[None])
    W = _xavier_uniform(k_w, (F_in, F_out), gain=1.414)
    a = _xavier_uniform(k_a, (2 * F_out, 1), gain=1.414)
    return x, adj, W, a


if __name__ == "__main__":
    ALPHA = 0.2          # leaky-relu negative slope
    DROPOUT = 0.1        # unused at inference (eval mode)

    key = jax.random.PRNGKey(0)
    k1, k2, k3 = jax.random.split(key, 3)

    # Tolerance reflects bf16 h / p / exp operands + approx reciprocal;
    # structural errors (masking / softmax axis / tiling) would be O(1).
    RTOL, ATOL = 3e-2, 3e-2

    # Case 1: shapes consistent with the module (B=2, N=8, F_in=16, F_out=32).
    x, adj, W, a = _make_case(k1, B=2, N=8, F_in=16, F_out=32)
    out = jax.block_until_ready(gat_forward(x, adj, W, a, alpha=ALPHA))
    ref = _reference(x, adj, W, a, ALPHA)
    np.testing.assert_allclose(np.asarray(out), np.asarray(ref),
                               rtol=RTOL, atol=ATOL)

    # Case 2: N not a tile multiple -> exercises the padding / masking path.
    x, adj, W, a = _make_case(k2, B=2, N=20, F_in=16, F_out=32)
    out = jax.block_until_ready(gat_forward(x, adj, W, a, alpha=ALPHA))
    ref = _reference(x, adj, W, a, ALPHA)
    np.testing.assert_allclose(np.asarray(out), np.asarray(ref),
                               rtol=RTOL, atol=ATOL)

    # Case 3: N > 512 -> multi q/k tiles, resident-h dynamic slicing, online
    # softmax accumulation across k tiles, row-tiled stage-1 grid.
    x, adj, W, a = _make_case(k3, B=2, N=600, F_in=16, F_out=32)
    out = jax.block_until_ready(gat_forward(x, adj, W, a, alpha=ALPHA))
    ref = _reference(x, adj, W, a, ALPHA)
    np.testing.assert_allclose(np.asarray(out), np.asarray(ref),
                               rtol=RTOL, atol=ATOL)

    print("KERNEL_OK")
</pallas_src>

<mosaic_0001>
module attributes {stable_mosaic.version = 11 : i64} {
  func.func @_project_kernel(%arg0: i32, %arg1: i32, %arg2: memref<1x128x16xf32, #tpu.memory_space<vmem>>, %arg3: memref<16x32xbf16, #tpu.memory_space<vmem>>, %arg4: memref<16x2xf32, #tpu.memory_space<vmem>>, %arg5: memref<1x128x32xbf16, #tpu.memory_space<vmem>>, %arg6: memref<1x128x2xf32, #tpu.memory_space<vmem>>) attributes {dimension_semantics = [#tpu.dimension_semantics<parallel>, #tpu.dimension_semantics<parallel>], iteration_bounds = array<i64: 2, 1>, scalar_prefetch = 0 : i64, scratch_operands = 0 : i64, tpu.core_type = #tpu.core_type<tc>, window_params = [{transform_indices = @transform_0, window_bounds = array<i64: 1, 128, 16>}, {pipeline_mode = #tpu.pipeline_mode<synchronous>, transform_indices = @transform_1, window_bounds = array<i64: 16, 32>}, {pipeline_mode = #tpu.pipeline_mode<synchronous>, transform_indices = @transform_2, window_bounds = array<i64: 16, 2>}, {transform_indices = @transform_3, window_bounds = array<i64: 1, 128, 32>}, {transform_indices = @transform_4, window_bounds = array<i64: 1, 128, 2>}]} {
    %c0 = arith.constant 0 : index
    %c0_0 = arith.constant 0 : index
    %c0_1 = arith.constant 0 : index
    %0 = vector.load %arg2[%c0, %c0_0, %c0_1] : memref<1x128x16xf32, #tpu.memory_space<vmem>>, vector<1x128x16xf32>
    %1 = vector.shape_cast %0 : vector<1x128x16xf32> to vector<128x16xf32>
    %2 = arith.truncf %1 : vector<128x16xf32> to vector<128x16xbf16>
    %c0_2 = arith.constant 0 : index
    %c0_3 = arith.constant 0 : index
    %3 = vector.load %arg3[%c0_2, %c0_3] : memref<16x32xbf16, #tpu.memory_space<vmem>>, vector<16x32xbf16>
    %cst = arith.constant dense<0.000000e+00> : vector<128x32xf32>
    %4 = tpu.matmul %2, %3, %cst {dimension_numbers = #tpu.dot_dimension_numbers<[1], [0], [0], [1], [0, 0, 1, 1], [], []>} : vector<128x16xbf16>, vector<16x32xbf16>, vector<128x32xf32> -> vector<128x32xf32>
    %5 = arith.truncf %4 : vector<128x32xf32> to vector<128x32xbf16>
    %c0_4 = arith.constant 0 : index
    %c0_5 = arith.constant 0 : index
    %c0_6 = arith.constant 0 : index
    %6 = vector.load %arg5[%c0_4, %c0_5, %c0_6] : memref<1x128x32xbf16, #tpu.memory_space<vmem>>, vector<1x128x32xbf16>
    %7 = vector.shape_cast %6 : vector<1x128x32xbf16> to vector<128x32xbf16>
    %8 = vector.shape_cast %5 : vector<128x32xbf16> to vector<1x128x32xbf16>
    tpu.vector_store %arg5[%c0_4, %c0_5, %c0_6], %8 {strides = array<i32>} : memref<1x128x32xbf16, #tpu.memory_space<vmem>>, vector<1x128x32xbf16>,
    %c0_7 = arith.constant 0 : index
    %c0_8 = arith.constant 0 : index
    %9 = vector.load %arg4[%c0_7, %c0_8] : memref<16x2xf32, #tpu.memory_space<vmem>>, vector<16x2xf32>
    %cst_9 = arith.constant dense<0.000000e+00> : vector<128x2xf32>
    %10 = tpu.matmul %1, %9, %cst_9 {dimension_numbers = #tpu.dot_dimension_numbers<[1], [0], [0], [1], [0, 0, 1, 1], [], []>} : vector<128x16xf32>, vector<16x2xf32>, vector<128x2xf32> -> vector<128x2xf32>
    %c0_10 = arith.constant 0 : index
    %c0_11 = arith.constant 0 : index
    %c0_12 = arith.constant 0 : index
    %11 = vector.load %arg6[%c0_10, %c0_11, %c0_12] : memref<1x128x2xf32, #tpu.memory_space<vmem>>, vector<1x128x2xf32>
    %12 = vector.shape_cast %11 : vector<1x128x2xf32> to vector<128x2xf32>
    %13 = vector.shape_cast %10 : vector<128x2xf32> to vector<1x128x2xf32>
    tpu.vector_store %arg6[%c0_10, %c0_11, %c0_12], %13 {strides = array<i32>} : memref<1x128x2xf32, #tpu.memory_space<vmem>>, vector<1x128x2xf32>,
    return
  }
  func.func @transform_0(%arg0: i32, %arg1: i32) -> (i32, i32, i32) {
    %c0_i32 = arith.constant 0 : i32
    %c0_i32_0 = arith.constant 0 : i32
    return %arg0, %arg1, %c0_i32 : i32, i32, i32
  }
  func.func @transform_1(%arg0: i32, %arg1: i32) -> (i32, i32) {
    %c0_i32 = arith.constant 0 : i32
    %c0_i32_0 = arith.constant 0 : i32
    %c0_i32_1 = arith.constant 0 : i32
    return %c0_i32, %c0_i32_0 : i32, i32
  }
  func.func @transform_2(%arg0: i32, %arg1: i32) -> (i32, i32) {
    %c0_i32 = arith.constant 0 : i32
    %c0_i32_0 = arith.constant 0 : i32
    %c0_i32_1 = arith.constant 0 : i32
    return %c0_i32, %c0_i32_0 : i32, i32
  }
  func.func @transform_3(%arg0: i32, %arg1: i32) -> (i32, i32, i32) {
    %c0_i32 = arith.constant 0 : i32
    %c0_i32_0 = arith.constant 0 : i32
    return %arg0, %arg1, %c0_i32 : i32, i32, i32
  }
  func.func @transform_4(%arg0: i32, %arg1: i32) -> (i32, i32, i32) {
    %c0_i32 = arith.constant 0 : i32
    %c0_i32_0 = arith.constant 0 : i32
    return %arg0, %arg1, %c0_i32 : i32, i32, i32
  }
}

</mosaic_0001>

<llo_original>
// kernel: tpu_custom_call.1
$region0: #{tpu_custom_call.1}
  #allocation0 [shape = 'u32[]', space=smem, size = 0x4, offset = 0x4, fixed_abs, tag = 'smem constant byte address 0x4 - core index']
  #allocation1 [shape = 'u32[144,128]{1,0:T(1,128)}', space=vmem, size = 0x12000, scoped, tag = 'internal scratch']
  %s0 = inlined_call_operand.vmem [shape: f32[2,128,16], index: 0, kind: input, shape index: {}]
  %s1 = inlined_call_operand.vmem [shape: bf16[16,32], index: 1, kind: input, shape index: {}]
  %s2 = inlined_call_operand.vmem [shape: f32[16,2], index: 2, kind: input, shape index: {}]
  %s3 = inlined_call_operand.vmem [shape: bf16[2,128,32], index: 3, kind: output, shape index: {0}]
  %s4 = inlined_call_operand.vmem [shape: f32[2,128,2], index: 4, kind: output, shape index: {1}]
  %5 = xla_tuple %s3, %s4
  %s6 = sld [smem:[#allocation0]]
  $region53: #{tpu_custom_call.1} parent=0
    _
  %s8 = ssub.s32 1, %s6
  %s9 = scalar_select 0, %s8, %s6
  loop: start=0, step=1, limit=4
  $region2: #{tpu_custom_call.1} parent=0 // loop_pre_header
    _
  $region3: #{tpu_custom_call.1} parent=0 // loop_header
    %s11 = sphi 0, %s15
    %p12 = scmp.ge.s32.totalorder %s11, 4
    %s18 = sphi 0, %s30
    %s19 = sphi 0, %s26
    %s20 = sphi 0, %s18
    %s21 = sphi 0, %s19
    %s22 = sphi 0, %s20
    %s23 = sphi 0, %s21
    %s35 = sphi 0, %s37
    %s38 = sphi 0, %s35
    %s39 = sphi 0, %s38
    %s55 = sphi 0, %s39
    %s59 = sphi 0, %s59
    %s61 = sphi 0, %s59
    %s62 = sphi 0, %s61
    %s76 = sphi 0, %s62
    %s80 = sphi 0, %s80
    %s82 = sphi 0, %s80
    %s83 = sphi 0, %s82
    %s97 = sphi 0, %s83
    %s105 = sphi 0, %s107
    %s108 = sphi 0, %s105
    %s109 = sphi 0, %s108
    %s125 = sphi 0, %s109
    %s133 = sphi 0, %s135
    %s136 = sphi 0, %s133
    %s137 = sphi 0, %s136
    %s153 = sphi 0, %s137
  $region4: #{tpu_custom_call.1} parent=0 // loop_header_branch
    %14 = sbr.rel (%p12) target = $region8
  $region5: #{tpu_custom_call.1} parent=0 // loop_body
    %s16 = ssub.s32 %s11, 1
    %s17 = ssub.s32 %s11, 2
    %s24 = sadd.s32 1, %s19
    %p25 = scmp.ge.s32.totalorder %s24, 1
    %s26 = scalar_select %p25, 0, %s24
    %s27 = sadd.s32 1, %s18
    %s28 = scalar_select %p25, %s27, %s18
    %p29 = scmp.ge.s32.totalorder %s28, 2
    %s30 = scalar_select %p29, 0, %s28
    %s31 = ssub.s32 %s18, %s30
    %s32 = ssub.s32 %s19, %s26
    %s33 = sor.u32 %s31, %s32
    %p34 = scmp.eq.s32.totalorder %s33, 0
    %s36 = sadd.s32 %s35, 1
    %s37 = scalar_select %p34, %s35, %s36
    %p40 = pneg %p34
    %p41 = scmp.eq.s32.totalorder %s11, 1
    %p42 = por %p40, %p41
    %p43 = scmp.ne.s32.totalorder %s35, %s38
    %p44 = scmp.eq.s32.totalorder %s11, 0
    %p45 = por %p43, %p44
    %p46 = scmp.ne.s32.totalorder %s35, %s38
    %p47 = scmp.eq.s32.totalorder %s16, 1
    %p48 = por %p46, %p47
    %p49 = scmp.ne.s32.totalorder %s38, %s39
    %p50 = scmp.eq.s32.totalorder %s16, 0
    %p51 = por %p49, %p50
    %p52 = scmp.ne.s32.totalorder %s38, %s39
    %p53 = scmp.eq.s32.totalorder %s17, 1
    %p54 = por %p52, %p53
    %p56 = scmp.ne.s32.totalorder %s39, %s55
    %p57 = scmp.eq.s32.totalorder %s17, 0
    %p58 = por %p56, %p57
    %s60 = sadd.s32 %s59, 1
    %p63 = scmp.eq.s32.totalorder %s11, 1
    %p64 = scmp.ne.s32.totalorder %s59, %s61
    %p65 = scmp.eq.s32.totalorder %s11, 0
    %p66 = por %p64, %p65
    %p67 = scmp.ne.s32.totalorder %s59, %s61
    %p68 = scmp.eq.s32.totalorder %s16, 1
    %p69 = por %p67, %p68
    %p70 = scmp.ne.s32.totalorder %s61, %s62
    %p71 = scmp.eq.s32.totalorder %s16, 0
    %p72 = por %p70, %p71
    %p73 = scmp.ne.s32.totalorder %s61, %s62
    %p74 = scmp.eq.s32.totalorder %s17, 1
    %p75 = por %p73, %p74
    %p77 = scmp.ne.s32.totalorder %s62, %s76
    %p78 = scmp.eq.s32.totalorder %s17, 0
    %p79 = por %p77, %p78
    %s81 = sadd.s32 %s80, 1
    %p84 = scmp.eq.s32.totalorder %s11, 1
    %p85 = scmp.ne.s32.totalorder %s80, %s82
    %p86 = scmp.eq.s32.totalorder %s11, 0
    %p87 = por %p85, %p86
    %p88 = scmp.ne.s32.totalorder %s80, %s82
    %p89 = scmp.eq.s32.totalorder %s16, 1
    %p90 = por %p88, %p89
    %p91 = scmp.ne.s32.totalorder %s82, %s83
    %p92 = scmp.eq.s32.totalorder %s16, 0
    %p93 = por %p91, %p92
    %p94 = scmp.ne.s32.totalorder %s82, %s83
    %p95 = scmp.eq.s32.totalorder %s17, 1
    %p96 = por %p94, %p95
    %p98 = scmp.ne.s32.totalorder %s83, %s97
    %p99 = scmp.eq.s32.totalorder %s17, 0
    %p100 = por %p98, %p99
    %s101 = ssub.s32 %s18, %s30
    %s102 = ssub.s32 %s19, %s26
    %s103 = sor.u32 %s101, %s102
    %p104 = scmp.eq.s32.totalorder %s103, 0
    %s106 = sadd.s32 %s105, 1
    %s107 = scalar_select %p104, %s105, %s106
    %p110 = pneg %p104
    %p111 = scmp.eq.s32.totalorder %s11, 1
    %p112 = por %p110, %p111
    %p113 = scmp.ne.s32.totalorder %s105, %s108
    %p114 = scmp.eq.s32.totalorder %s11, 0
    %p115 = por %p113, %p114
    %p116 = scmp.ne.s32.totalorder %s105, %s108
    %p117 = scmp.eq.s32.totalorder %s16, 1
    %p118 = por %p116, %p117
    %p119 = scmp.ne.s32.totalorder %s108, %s109
    %p120 = scmp.eq.s32.totalorder %s16, 0
    %p121 = por %p119, %p120
    %p122 = scmp.ne.s32.totalorder %s108, %s109
    %p123 = scmp.eq.s32.totalorder %s17, 1
    %p124 = por %p122, %p123
    %p126 = scmp.ne.s32.totalorder %s109, %s125
    %p127 = scmp.eq.s32.totalorder %s17, 0
    %p128 = por %p126, %p127
    %s129 = ssub.s32 %s18, %s30
    %s130 = ssub.s32 %s19, %s26
    %s131 = sor.u32 %s129, %s130
    %p132 = scmp.eq.s32.totalorder %s131, 0
    %s134 = sadd.s32 %s133, 1
    %s135 = scalar_select %p132, %s133, %s134
    %p138 = pneg %p132
    %p139 = scmp.eq.s32.totalorder %s11, 1
    %p140 = por %p138, %p139
    %p141 = scmp.ne.s32.totalorder %s133, %s136
    %p142 = scmp.eq.s32.totalorder %s11, 0
    %p143 = por %p141, %p142
    %p144 = scmp.ne.s32.totalorder %s133, %s136
    %p145 = scmp.eq.s32.totalorder %s16, 1
    %p146 = por %p144, %p145
    %p147 = scmp.ne.s32.totalorder %s136, %s137
    %p148 = scmp.eq.s32.totalorder %s16, 0
    %p149 = por %p147, %p148
    %p150 = scmp.ne.s32.totalorder %s136, %s137
    %p151 = scmp.eq.s32.totalorder %s17, 1
    %p152 = por %p150, %p151
    %p154 = scmp.ne.s32.totalorder %s137, %s153
    %p155 = scmp.eq.s32.totalorder %s17, 0
    %p156 = por %p154, %p155
    %p157 = scmp.le.s32.totalorder 1, %s11
    %p158 = scmp.lt.s32.totalorder %s11, 3
    %p159 = pnand %p157, %p158
    %p160 = pneg %p159
    // Predicated region
    $region9: #{tpu_custom_call.1} parent=5 // pred_check
      _
    $region10: #{tpu_custom_call.1} parent=5 // pred_check_branch
      %162 = sbr.rel (%p159) target = $region12
    $region11: #{tpu_custom_call.1} parent=5 // pred_region
      %s163 = ssub.s32 %s11, 1
      // Predicated region
      $region13: #{tpu_custom_call.1} parent=11 // pred_check
        %p164 = pneg %p72
      $region14: #{tpu_custom_call.1} parent=11 // pred_check_branch
        %166 = sbr.rel (%p164) target = $region16
      $region15: #{tpu_custom_call.1} parent=11 // pred_region
        _
      $region16: #{tpu_custom_call.1} parent=11 // pred_fallthru
        _
      // Predicated region
      $region17: #{tpu_custom_call.1} parent=11 // pred_check
        %p167 = pneg %p93
      $region18: #{tpu_custom_call.1} parent=11 // pred_check_branch
        %169 = sbr.rel (%p167) target = $region20
      $region19: #{tpu_custom_call.1} parent=11 // pred_region
        _
      $region20: #{tpu_custom_call.1} parent=11 // pred_fallthru
        _
    $region12: #{tpu_custom_call.1} parent=5 // pred_fallthru
      _
    %p170 = scmp.lt.s32.totalorder %s11, 2
    // Predicated region
    $region21: #{tpu_custom_call.1} parent=5 // pred_check
      %p171 = pneg %p170
    $region22: #{tpu_custom_call.1} parent=5 // pred_check_branch
      %173 = sbr.rel (%p171) target = $region24
    $region23: #{tpu_custom_call.1} parent=5 // pred_region
      // Predicated region
      $region25: #{tpu_custom_call.1} parent=23 // pred_check
        %p174 = pneg %p45
      $region26: #{tpu_custom_call.1} parent=23 // pred_check_branch
        %176 = sbr.rel (%p174) target = $region28
      $region27: #{tpu_custom_call.1} parent=23 // pred_region
        %s177 = smul.u32 16, %s19
        %p178 = scmp.lt.s32.totalorder %s18, 1
        %s179 = scalar_select %p178, %s18, 1
        %p180 = scmp.lt.s32.totalorder %s177, 15
        %s181 = scalar_select %p180, %s177, 15
        %s182 = smul.addr %s179, 16
        %s183 = sadd.s32 %s181, %s182
        %s184 = smul.addr %s183, 8
        %s185 = scalar_lea.vmem %s0, %s184
        %s186 = smul.u32 16, %s19
      $region28: #{tpu_custom_call.1} parent=23 // pred_fallthru
        _
    $region24: #{tpu_custom_call.1} parent=5 // pred_fallthru
      _
    %p187 = scmp.le.s32.totalorder 1, %s11
    %p188 = scmp.lt.s32.totalorder %s11, 3
    %p189 = pnand %p187, %p188
    %p190 = pneg %p189
    // Predicated region
    $region29: #{tpu_custom_call.1} parent=5 // pred_check
      _
    $region30: #{tpu_custom_call.1} parent=5 // pred_check_branch
      %192 = sbr.rel (%p189) target = $region32
    $region31: #{tpu_custom_call.1} parent=5 // pred_region
      %s193 = ssub.s32 %s11, 1
      %s194 = smul.u32 16, %s21
      %p195 = scmp.lt.s32.totalorder %s20, 1
      %s196 = scalar_select %p195, %s20, 1
      %p197 = scmp.lt.s32.totalorder %s194, 15
      %s198 = scalar_select %p197, %s194, 15
      %s199 = smul.addr %s196, 16
      %s200 = sadd.s32 %s198, %s199
      %s201 = smul.addr %s200, 8
      %s202 = scalar_lea.vmem %s0, %s201
      %p203 = pneg %p51
      %p204 = pneg %p48
      %p205 = pneg %p72
      %p206 = pneg %p69
      %p207 = pneg %p93
      %p208 = pneg %p90
      %p209 = pneg %p121
      %p210 = pneg %p118
      %s211 = smul.u32 16, %s21
      %p212 = scmp.lt.s32.totalorder %s20, 1
      %s213 = scalar_select %p212, %s20, 1
      %p214 = scmp.lt.s32.totalorder %s211, 15
      %s215 = scalar_select %p214, %s211, 15
      %s216 = smul.addr %s213, 16
      %s217 = sadd.s32 %s215, %s216
      %s218 = smul.addr %s217, 4
      %s219 = scalar_lea.vmem %s3, %s218
      %p220 = pneg %p149
      %p221 = pneg %p146
      %s222 = smul.u32 16, %s21
      %p223 = scmp.lt.s32.totalorder %s20, 1
      %s224 = scalar_select %p223, %s20, 1
      %p225 = scmp.lt.s32.totalorder %s222, 15
      %s226 = scalar_select %p225, %s222, 15
      %s227 = smul.addr %s224, 16
      %s228 = sadd.s32 %s226, %s227
      %s229 = smul.addr %s228, 8
      %s230 = scalar_lea.vmem %s4, %s229
      %s231 = smul.u32 16, %s21
      %p232 = scmp.lt.s32.totalorder %s20, 1
      %s233 = scalar_select %p232, %s20, 1
      %p234 = scmp.lt.s32.totalorder %s231, 15
      %s235 = scalar_select %p234, %s231, 15
      %s236 = smul.addr %s233, 16
      %s237 = sadd.s32 %s235, %s236
      %s238 = smul.addr %s237, 8
      %s239 = scalar_lea.vmem %s0, %s238
      %s240 = smul.u32 16, %s21
      %s241 = smul.u32 16, %s21
      %p242 = scmp.lt.s32.totalorder %s20, 1
      %s243 = scalar_select %p242, %s20, 1
      %p244 = scmp.lt.s32.totalorder %s241, 15
      %s245 = scalar_select %p244, %s241, 15
      %s246 = smul.addr %s243, 16
      %s247 = sadd.s32 %s245, %s246
      %s248 = smul.addr %s247, 4
      %s249 = scalar_lea.vmem %s3, %s248
      %s250 = smul.u32 16, %s21
      %s251 = smul.u32 16, %s21
      %p252 = scmp.lt.s32.totalorder %s20, 1
      %s253 = scalar_select %p252, %s20, 1
      %p254 = scmp.lt.s32.totalorder %s251, 15
      %s255 = scalar_select %p254, %s251, 15
      %s256 = smul.addr %s253, 16
      %s257 = sadd.s32 %s255, %s256
      %s258 = smul.addr %s257, 8
      %s259 = scalar_lea.vmem %s4, %s258
      %s260 = smul.u32 16, %s21
      %v262 = vld [vmem:[%s239] sm:$0xff]
      %v263 = vld [vmem:[%s239 + $0x8] sm:$0xff]
      %v264 = vld [vmem:[%s239 + $0x10] sm:$0xff]
      %v265 = vld [vmem:[%s239 + $0x18] sm:$0xff]
      %v266 = vld [vmem:[%s239 + $0x20] sm:$0xff]
      %v267 = vld [vmem:[%s239 + $0x28] sm:$0xff]
      %v268 = vld [vmem:[%s239 + $0x30] sm:$0xff]
      %v269 = vld [vmem:[%s239 + $0x38] sm:$0xff]
      %v270 = vld [vmem:[%s239 + $0x40] sm:$0xff]
      %v271 = vld [vmem:[%s239 + $0x48] sm:$0xff]
      %v272 = vld [vmem:[%s239 + $0x50] sm:$0xff]
      %v273 = vld [vmem:[%s239 + $0x58] sm:$0xff]
      %v274 = vld [vmem:[%s239 + $0x60] sm:$0xff]
      %v275 = vld [vmem:[%s239 + $0x68] sm:$0xff]
      %v276 = vld [vmem:[%s239 + $0x70] sm:$0xff]
      %v277 = vld [vmem:[%s239 + $0x78] sm:$0xff]
      %v278 = vpack.c.bf16 %v263, %v262
      %v279 = vpack.c.bf16 %v265, %v264
      %v280 = vpack.c.bf16 %v267, %v266
      %v281 = vpack.c.bf16 %v269, %v268
      %v282 = vpack.c.bf16 %v271, %v270
      %v283 = vpack.c.bf16 %v273, %v272
      %v284 = vpack.c.bf16 %v275, %v274
      %v285 = vpack.c.bf16 %v277, %v276
      %v286 = vld [vmem:[%s1] sm:$0xf]
      %v287 = vld [vmem:[%s1 + $0x4] sm:$0xf]
      %v290 = vunpack.c.l.b16 %v286
      %v291 = vunpack.c.l.b16 %v287
      %v292 = vpack.c.b16 %v291, %v290
      %vm294 = vcmask 130048
      %v296 = vsel %vm294, %v278, 0
      %v299 = vsel %vm294, %v279, 0
      %v302 = vsel %vm294, %v280, 0
      %v305 = vsel %vm294, %v281, 0
      %v308 = vsel %vm294, %v282, 0
      %v311 = vsel %vm294, %v283, 0
      %v314 = vsel %vm294, %v284, 0
      %v317 = vsel %vm294, %v285, 0
      %319 = vmatprep.subr.bf16.mxu0 0
      %320 = vmatpush1.bf16.msra.mxu0 %v292
      %321 = vmatprep.subr.bf16.mxu0 0
      %322 = vmatpush1.bf16.msra.mxu0 0
      %323 = vmatprep.subr.bf16.mxu0 0
      %324 = vmatpush1.bf16.msra.mxu0 0
      %325 = vmatprep.subr.bf16.mxu0 0
      %326 = vmatpush1.bf16.msra.mxu0 0
      %327 = vmatprep.subr.bf16.mxu0 0
      %328 = vmatpush1.bf16.msra.mxu0 0
      %329 = vmatprep.subr.bf16.mxu0 0
      %330 = vmatpush1.bf16.msra.mxu0 0
      %331 = vmatprep.subr.bf16.mxu0 0
      %332 = vmatpush1.bf16.msra.mxu0 0
      %333 = vmatprep.subr.bf16.mxu0 0
      %334 = vmatpush1.bf16.msra.mxu0 0
      %335 = vmatprep.subr.bf16.mxu0 0
      %336 = vmatpush1.bf16.msra.mxu0 0
      %337 = vmatprep.subr.bf16.mxu0 0
      %338 = vmatpush1.bf16.msra.mxu0 0
      %339 = vmatprep.subr.bf16.mxu0 0
      %340 = vmatpush1.bf16.msra.mxu0 0
      %341 = vmatprep.subr.bf16.mxu0 0
      %342 = vmatpush1.bf16.msra.mxu0 0
      %343 = vmatprep.subr.bf16.mxu0 0
      %344 = vmatpush1.bf16.msra.mxu0 0
      %345 = vmatprep.subr.bf16.mxu0 0
      %346 = vmatpush1.bf16.msra.mxu0 0
      %347 = vmatprep.subr.bf16.mxu0 0
      %348 = vmatpush1.bf16.msra.mxu0 0
      %349 = vmatprep.subr.bf16.mxu0 0
      %350 = vmatpush1.bf16.msra.mxu0 0
      %351 = vmatprep.mubr.bf16.mxu0 0
      %352 = vmatmul.mubr.bf16.gmra.mrb[0].mxu0 %v296
      %v353 = vpop.f32.mrb[0].mxu0
      %v354 = vadd.f32 0.0, %v353
      %v355 = vpop.f32.mrb[0].mxu0
      %v356 = vpop.f32.mrb[0].mxu0
      %v357 = vadd.f32 0.0, %v356
      %v358 = vpop.f32.mrb[0].mxu0
      %359 = vmatprep.mubr.bf16.mxu0 0
      %360 = vmatmul.mubr.bf16.gmra.mrb[0].mxu0 %v299
      %v361 = vpop.f32.mrb[0].mxu0
      %v362 = vadd.f32 0.0, %v361
      %v363 = vpop.f32.mrb[0].mxu0
      %v364 = vpop.f32.mrb[0].mxu0
      %v365 = vadd.f32 0.0, %v364
      %v366 = vpop.f32.mrb[0].mxu0
      %367 = vmatprep.mubr.bf16.mxu0 0
      %368 = vmatmul.mubr.bf16.gmra.mrb[0].mxu0 %v302
      %v369 = vpop.f32.mrb[0].mxu0
      %v370 = vadd.f32 0.0, %v369
      %v371 = vpop.f32.mrb[0].mxu0
      %v372 = vpop.f32.mrb[0].mxu0
      %v373 = vadd.f32 0.0, %v372
      %v374 = vpop.f32.mrb[0].mxu0
      %375 = vmatprep.mubr.bf16.mxu0 0
      %376 = vmatmul.mubr.bf16.gmra.mrb[0].mxu0 %v305
      %v377 = vpop.f32.mrb[0].mxu0
      %v378 = vadd.f32 0.0, %v377
      %v379 = vpop.f32.mrb[0].mxu0
      %v380 = vpop.f32.mrb[0].mxu0
      %v381 = vadd.f32 0.0, %v380
      %v382 = vpop.f32.mrb[0].mxu0
      %383 = vmatprep.mubr.bf16.mxu0 0
      %384 = vmatmul.mubr.bf16.gmra.mrb[0].mxu0 %v308
      %v385 = vpop.f32.mrb[0].mxu0
      %v386 = vadd.f32 0.0, %v385
      %v387 = vpop.f32.mrb[0].mxu0
      %v388 = vpop.f32.mrb[0].mxu0
      %v389 = vadd.f32 0.0, %v388
      %v390 = vpop.f32.mrb[0].mxu0
      %391 = vmatprep.mubr.bf16.mxu0 0
      %392 = vmatmul.mubr.bf16.gmra.mrb[0].mxu0 %v311
      %v393 = vpop.f32.mrb[0].mxu0
      %v394 = vadd.f32 0.0, %v393
      %v395 = vpop.f32.mrb[0].mxu0
      %v396 = vpop.f32.mrb[0].mxu0
      %v397 = vadd.f32 0.0, %v396
      %v398 = vpop.f32.mrb[0].mxu0
      %399 = vmatprep.mubr.bf16.mxu0 0
      %400 = vmatmul.mubr.bf16.gmra.mrb[0].mxu0 %v314
      %v401 = vpop.f32.mrb[0].mxu0
      %v402 = vadd.f32 0.0, %v401
      %v403 = vpop.f32.mrb[0].mxu0
      %v404 = vpop.f32.mrb[0].mxu0
      %v405 = vadd.f32 0.0, %v404
      %v406 = vpop.f32.mrb[0].mxu0
      %407 = vmatprep.mubr.bf16.mxu0 0
      %408 = vmatmul.mubr.bf16.gmra.mrb[0].mxu0 %v317
      %v409 = vpop.f32.mrb[0].mxu0
      %v410 = vadd.f32 0.0, %v409
      %v411 = vpop.f32.mrb[0].mxu0
      %v412 = vpop.f32.mrb[0].mxu0
      %v413 = vadd.f32 0.0, %v412
      %v414 = vpop.f32.mrb[0].mxu0
      %415 = vdwg.mxu0
      %v416 = vpack.c.bf16 %v357, %v354
      %v417 = vpack.c.bf16 %v365, %v362
      %v418 = vpack.c.bf16 %v373, %v370
      %v419 = vpack.c.bf16 %v381, %v378
      %v420 = vpack.c.bf16 %v389, %v386
      %v421 = vpack.c.bf16 %v397, %v394
      %v422 = vpack.c.bf16 %v405, %v402
      %v423 = vpack.c.bf16 %v413, %v410
      %v432 = vunpack.c.l.b16 %v416
      %v433 = vunpack.c.h.b16 %v416
      %v434 = vunpack.c.l.b16 %v417
      %v435 = vunpack.c.h.b16 %v417
      %v436 = vunpack.c.l.b16 %v418
      %v437 = vunpack.c.h.b16 %v418
      %v438 = vunpack.c.l.b16 %v419
      %v439 = vunpack.c.h.b16 %v419
      %v440 = vunpack.c.l.b16 %v420
      %v441 = vunpack.c.h.b16 %v420
      %v442 = vunpack.c.l.b16 %v421
      %v443 = vunpack.c.h.b16 %v421
      %v444 = vunpack.c.l.b16 %v422
      %v445 = vunpack.c.h.b16 %v422
      %v446 = vunpack.c.l.b16 %v423
      %v447 = vunpack.c.h.b16 %v423
      %v448 = vpack.c.b16 %v432, %v432
      %v449 = vpack.c.b16 %v433, %v433
      %v450 = vpack.c.b16 %v434, %v434
      %v451 = vpack.c.b16 %v435, %v435
      %v452 = vpack.c.b16 %v436, %v436
      %v453 = vpack.c.b16 %v437, %v437
      %v454 = vpack.c.b16 %v438, %v438
      %v455 = vpack.c.b16 %v439, %v439
      %v456 = vpack.c.b16 %v440, %v440
      %v457 = vpack.c.b16 %v441, %v441
      %v458 = vpack.c.b16 %v442, %v442
      %v459 = vpack.c.b16 %v443, %v443
      %v460 = vpack.c.b16 %v444, %v444
      %v461 = vpack.c.b16 %v445, %v445
      %v462 = vpack.c.b16 %v446, %v446
      %v463 = vpack.c.b16 %v447, %v447
      %vm480 = vcmask 257024
      %481 = vst.msk [vmem:[%s249] sm:$0xf] %vm480, %v448
      %482 = vst.msk [vmem:[%s249 + $0x4] sm:$0xf] %vm480, %v449
      %483 = vst.msk [vmem:[%s249 + $0x8] sm:$0xf] %vm480, %v450
      %484 = vst.msk [vmem:[%s249 + $0xc] sm:$0xf] %vm480, %v451
      %485 = vst.msk [vmem:[%s249 + $0x10] sm:$0xf] %vm480, %v452
      %486 = vst.msk [vmem:[%s249 + $0x14] sm:$0xf] %vm480, %v453
      %487 = vst.msk [vmem:[%s249 + $0x18] sm:$0xf] %vm480, %v454
      %488 = vst.msk [vmem:[%s249 + $0x1c] sm:$0xf] %vm480, %v455
      %489 = vst.msk [vmem:[%s249 + $0x20] sm:$0xf] %vm480, %v456
      %490 = vst.msk [vmem:[%s249 + $0x24] sm:$0xf] %vm480, %v457
      %491 = vst.msk [vmem:[%s249 + $0x28] sm:$0xf] %vm480, %v458
      %492 = vst.msk [vmem:[%s249 + $0x2c] sm:$0xf] %vm480, %v459
      %493 = vst.msk [vmem:[%s249 + $0x30] sm:$0xf] %vm480, %v460
      %494 = vst.msk [vmem:[%s249 + $0x34] sm:$0xf] %vm480, %v461
      %495 = vst.msk [vmem:[%s249 + $0x38] sm:$0xf] %vm480, %v462
      %496 = vst.msk [vmem:[%s249 + $0x3c] sm:$0xf] %vm480, %v463
      %v497 = vld [vmem:[%s2] sm:$0xff]
      %v498 = vld [vmem:[%s2 + $0x8] sm:$0xff]
      %v500 = vsel %vm294, %v262, 0
      %v503 = vsel %vm294, %v263, 0
      %v506 = vsel %vm294, %v264, 0
      %v509 = vsel %vm294, %v265, 0
      %v512 = vsel %vm294, %v266, 0
      %v515 = vsel %vm294, %v267, 0
      %v518 = vsel %vm294, %v268, 0
      %v521 = vsel %vm294, %v269, 0
      %v524 = vsel %vm294, %v270, 0
      %v527 = vsel %vm294, %v271, 0
      %v530 = vsel %vm294, %v272, 0
      %v533 = vsel %vm294, %v273, 0
      %v536 = vsel %vm294, %v274, 0
      %v539 = vsel %vm294, %v275, 0
      %v542 = vsel %vm294, %v276, 0
      %v545 = vsel %vm294, %v277, 0
      %547 = vmatprep.subr.mxu0 0.0
      %548 = vmatpush1.msra.mxu0 %v497
      %549 = vmatprep.subr.mxu0 0.0
      %550 = vmatpush1.msra.mxu0 %v498
      %551 = vmatprep.subr.mxu0 0.0
      %552 = vmatpush1.msra.mxu0 0.0
      %553 = vmatprep.subr.mxu0 0.0
      %554 = vmatpush1.msra.mxu0 0.0
      %555 = vmatprep.subr.mxu0 0.0
      %556 = vmatpush1.msra.mxu0 0.0
      %557 = vmatprep.subr.mxu0 0.0
      %558 = vmatpush1.msra.mxu0 0.0
      %559 = vmatprep.subr.mxu0 0.0
      %560 = vmatpush1.msra.mxu0 0.0
      %561 = vmatprep.subr.mxu0 0.0
      %562 = vmatpush1.msra.mxu0 0.0
      %563 = vmatprep.subr.mxu0 0.0
      %564 = vmatpush1.msra.mxu0 0.0
      %565 = vmatprep.subr.mxu0 0.0
      %566 = vmatpush1.msra.mxu0 0.0
      %567 = vmatprep.subr.mxu0 0.0
      %568 = vmatpush1.msra.mxu0 0.0
      %569 = vmatprep.subr.mxu0 0.0
      %570 = vmatpush1.msra.mxu0 0.0
      %571 = vmatprep.subr.mxu0 0.0
      %572 = vmatpush1.msra.mxu0 0.0
      %573 = vmatprep.subr.mxu0 0.0
      %574 = vmatpush1.msra.mxu0 0.0
      %575 = vmatprep.subr.mxu0 0.0
      %576 = vmatpush1.msra.mxu0 0.0
      %577 = vmatprep.subr.mxu0 0.0
      %578 = vmatpush1.msra.mxu0 0.0
      %579 = vmatprep.subr.mxu0 0.0
      %580 = vmatpush1.msra.mxu0 0.0
      %581 = vmatprep.subr.mxu0 0.0
      %582 = vmatpush1.msra.mxu0 0.0
      %583 = vmatprep.subr.mxu0 0.0
      %584 = vmatpush1.msra.mxu0 0.0
      %585 = vmatprep.subr.mxu0 0.0
      %586 = vmatpush1.msra.mxu0 0.0
      %587 = vmatprep.subr.mxu0 0.0
      %588 = vmatpush1.msra.mxu0 0.0
      %589 = vmatprep.subr.mxu0 0.0
      %590 = vmatpush1.msra.mxu0 0.0
      %591 = vmatprep.subr.mxu0 0.0
      %592 = vmatpush1.msra.mxu0 0.0
      %593 = vmatprep.subr.mxu0 0.0
      %594 = vmatpush1.msra.mxu0 0.0
      %595 = vmatprep.subr.mxu0 0.0
      %596 = vmatpush1.msra.mxu0 0.0
      %597 = vmatprep.subr.mxu0 0.0
      %598 = vmatpush1.msra.mxu0 0.0
      %599 = vmatprep.subr.mxu0 0.0
      %600 = vmatpush1.msra.mxu0 0.0
      %601 = vmatprep.subr.mxu0 0.0
      %602 = vmatpush1.msra.mxu0 0.0
      %603 = vmatprep.subr.mxu0 0.0
      %604 = vmatpush1.msra.mxu0 0.0
      %605 = vmatprep.subr.mxu0 0.0
      %606 = vmatpush1.msra.mxu0 0.0
      %607 = vmatprep.subr.mxu0 0.0
      %608 = vmatpush1.msra.mxu0 0.0
      %609 = vmatprep.subr.mxu0 0.0
      %610 = vmatpush1.msra.mxu0 0.0
      %611 = vmatprep.mubr.f32.mxu0 0.0
      %612 = vmatmul.mubr.f32.gmra.mrb[0].mxu0 %v500
      %v613 = vpop.f32.mrb[0].mxu0
      %v614 = vadd.f32 0.0, %v613
      %v615 = vpop.f32.mrb[0].mxu0
      %616 = vmatprep.mubr.f32.mxu0 0.0
      %617 = vmatmul.mubr.f32.gmra.mrb[0].mxu0 %v503
      %v618 = vpop.f32.mrb[0].mxu0
      %v619 = vadd.f32 0.0, %v618
      %v620 = vpop.f32.mrb[0].mxu0
      %621 = vmatprep.mubr.f32.mxu0 0.0
      %622 = vmatmul.mubr.f32.gmra.mrb[0].mxu0 %v506
      %v623 = vpop.f32.mrb[0].mxu0
      %v624 = vadd.f32 0.0, %v623
      %v625 = vpop.f32.mrb[0].mxu0
      %626 = vmatprep.mubr.f32.mxu0 0.0
      %627 = vmatmul.mubr.f32.gmra.mrb[0].mxu0 %v509
      %v628 = vpop.f32.mrb[0].mxu0
      %v629 = vadd.f32 0.0, %v628
      %v630 = vpop.f32.mrb[0].mxu0
      %631 = vmatprep.mubr.f32.mxu0 0.0
      %632 = vmatmul.mubr.f32.gmra.mrb[0].mxu0 %v512
      %v633 = vpop.f32.mrb[0].mxu0
      %v634 = vadd.f32 0.0, %v633
      %v635 = vpop.f32.mrb[0].mxu0
      %636 = vmatprep.mubr.f32.mxu0 0.0
      %637 = vmatmul.mubr.f32.gmra.mrb[0].mxu0 %v515
      %v638 = vpop.f32.mrb[0].mxu0
      %v639 = vadd.f32 0.0, %v638
      %v640 = vpop.f32.mrb[0].mxu0
      %641 = vmatprep.mubr.f32.mxu0 0.0
      %642 = vmatmul.mubr.f32.gmra.mrb[0].mxu0 %v518
      %v643 = vpop.f32.mrb[0].mxu0
      %v644 = vadd.f32 0.0, %v643
      %v645 = vpop.f32.mrb[0].mxu0
      %646 = vmatprep.mubr.f32.mxu0 0.0
      %647 = vmatmul.mubr.f32.gmra.mrb[0].mxu0 %v521
      %v648 = vpop.f32.mrb[0].mxu0
      %v649 = vadd.f32 0.0, %v648
      %v650 = vpop.f32.mrb[0].mxu0
      %651 = vmatprep.mubr.f32.mxu0 0.0
      %652 = vmatmul.mubr.f32.gmra.mrb[0].mxu0 %v524
      %v653 = vpop.f32.mrb[0].mxu0
      %v654 = vadd.f32 0.0, %v653
      %v655 = vpop.f32.mrb[0].mxu0
      %656 = vmatprep.mubr.f32.mxu0 0.0
      %657 = vmatmul.mubr.f32.gmra.mrb[0].mxu0 %v527
      %v658 = vpop.f32.mrb[0].mxu0
      %v659 = vadd.f32 0.0, %v658
      %v660 = vpop.f32.mrb[0].mxu0
      %661 = vmatprep.mubr.f32.mxu0 0.0
      %662 = vmatmul.mubr.f32.gmra.mrb[0].mxu0 %v530
      %v663 = vpop.f32.mrb[0].mxu0
      %v664 = vadd.f32 0.0, %v663
      %v665 = vpop.f32.mrb[0].mxu0
      %666 = vmatprep.mubr.f32.mxu0 0.0
      %667 = vmatmul.mubr.f32.gmra.mrb[0].mxu0 %v533
      %v668 = vpop.f32.mrb[0].mxu0
      %v669 = vadd.f32 0.0, %v668
      %v670 = vpop.f32.mrb[0].mxu0
      %671 = vmatprep.mubr.f32.mxu0 0.0
      %672 = vmatmul.mubr.f32.gmra.mrb[0].mxu0 %v536
      %v673 = vpop.f32.mrb[0].mxu0
      %v674 = vadd.f32 0.0, %v673
      %v675 = vpop.f32.mrb[0].mxu0
      %676 = vmatprep.mubr.f32.mxu0 0.0
      %677 = vmatmul.mubr.f32.gmra.mrb[0].mxu0 %v539
      %v678 = vpop.f32.mrb[0].mxu0
      %v679 = vadd.f32 0.0, %v678
      %v680 = vpop.f32.mrb[0].mxu0
      %681 = vmatprep.mubr.f32.mxu0 0.0
      %682 = vmatmul.mubr.f32.gmra.mrb[0].mxu0 %v542
      %v683 = vpop.f32.mrb[0].mxu0
      %v684 = vadd.f32 0.0, %v683
      %v685 = vpop.f32.mrb[0].mxu0
      %686 = vmatprep.mubr.f32.mxu0 0.0
      %687 = vmatmul.mubr.f32.gmra.mrb[0].mxu0 %v545
      %v688 = vpop.f32.mrb[0].mxu0
      %v689 = vadd.f32 0.0, %v688
      %v690 = vpop.f32.mrb[0].mxu0
      %691 = vdwg.mxu0
      %vm692 = vcmask 15360
      %693 = vst.msk [vmem:[%s259] sm:$0xff] %vm692, %v614
      %694 = vst.msk [vmem:[%s259 + $0x8] sm:$0xff] %vm692, %v619
      %695 = vst.msk [vmem:[%s259 + $0x10] sm:$0xff] %vm692, %v624
      %696 = vst.msk [vmem:[%s259 + $0x18] sm:$0xff] %vm692, %v629
      %697 = vst.msk [vmem:[%s259 + $0x20] sm:$0xff] %vm692, %v634
      %698 = vst.msk [vmem:[%s259 + $0x28] sm:$0xff] %vm692, %v639
      %699 = vst.msk [vmem:[%s259 + $0x30] sm:$0xff] %vm692, %v644
      %700 = vst.msk [vmem:[%s259 + $0x38] sm:$0xff] %vm692, %v649
      %701 = vst.msk [vmem:[%s259 + $0x40] sm:$0xff] %vm692, %v654
      %702 = vst.msk [vmem:[%s259 + $0x48] sm:$0xff] %vm692, %v659
      %703 = vst.msk [vmem:[%s259 + $0x50] sm:$0xff] %vm692, %v664
      %704 = vst.msk [vmem:[%s259 + $0x58] sm:$0xff] %vm692, %v669
      %705 = vst.msk [vmem:[%s259 + $0x60] sm:$0xff] %vm692, %v674
      %706 = vst.msk [vmem:[%s259 + $0x68] sm:$0xff] %vm692, %v679
      %707 = vst.msk [vmem:[%s259 + $0x70] sm:$0xff] %vm692, %v684
      %708 = vst.msk [vmem:[%s259 + $0x78] sm:$0xff] %vm692, %v689
      %s709 = smul.u32 16, %s21
      %p710 = scmp.lt.s32.totalorder %s20, 1
      %s711 = scalar_select %p710, %s20, 1
      %p712 = scmp.lt.s32.totalorder %s709, 15
      %s713 = scalar_select %p712, %s709, 15
      %s714 = smul.addr %s711, 16
      %s715 = sadd.s32 %s713, %s714
      %s716 = smul.addr %s715, 4
      %s717 = scalar_lea.vmem %s3, %s716
      %s718 = smul.u32 16, %s21
      %p719 = scmp.lt.s32.totalorder %s20, 1
      %s720 = scalar_select %p719, %s20, 1
      %p721 = scmp.lt.s32.totalorder %s718, 15
      %s722 = scalar_select %p721, %s718, 15
      %s723 = smul.addr %s720, 16
      %s724 = sadd.s32 %s722, %s723
      %s725 = smul.addr %s724, 8
      %s726 = scalar_lea.vmem %s4, %s725
      // Predicated region
      $region33: #{tpu_custom_call.1} parent=31 // pred_check
        %p727 = pneg %p118
      $region34: #{tpu_custom_call.1} parent=31 // pred_check_branch
        %729 = sbr.rel (%p727) target = $region36
      $region35: #{tpu_custom_call.1} parent=31 // pred_region
        %s730 = smul.u32 16, %s21
      $region36: #{tpu_custom_call.1} parent=31 // pred_fallthru
        _
      // Predicated region
      $region37: #{tpu_custom_call.1} parent=31 // pred_check
        %p731 = pneg %p146
      $region38: #{tpu_custom_call.1} parent=31 // pred_check_branch
        %733 = sbr.rel (%p731) target = $region40
      $region39: #{tpu_custom_call.1} parent=31 // pred_region
        %s734 = smul.u32 16, %s21
      $region40: #{tpu_custom_call.1} parent=31 // pred_fallthru
        _
    $region32: #{tpu_custom_call.1} parent=5 // pred_fallthru
      _
    %p735 = scmp.le.s32.totalorder 2, %s11
    // Predicated region
    $region41: #{tpu_custom_call.1} parent=5 // pred_check
      %p736 = pneg %p735
    $region42: #{tpu_custom_call.1} parent=5 // pred_check_branch
      %738 = sbr.rel (%p736) target = $region44
    $region43: #{tpu_custom_call.1} parent=5 // pred_region
      %s739 = ssub.s32 %s11, 2
      // Predicated region
      $region45: #{tpu_custom_call.1} parent=43 // pred_check
        %p740 = pneg %p124
      $region46: #{tpu_custom_call.1} parent=43 // pred_check_branch
        %742 = sbr.rel (%p740) target = $region48
      $region47: #{tpu_custom_call.1} parent=43 // pred_region
        %s743 = smul.u32 16, %s23
        %p744 = scmp.lt.s32.totalorder %s22, 1
        %s745 = scalar_select %p744, %s22, 1
        %p746 = scmp.lt.s32.totalorder %s743, 15
        %s747 = scalar_select %p746, %s743, 15
        %s748 = smul.addr %s745, 16
        %s749 = sadd.s32 %s747, %s748
        %s750 = smul.addr %s749, 4
        %s751 = scalar_lea.vmem %s3, %s750
      $region48: #{tpu_custom_call.1} parent=43 // pred_fallthru
        _
      // Predicated region
      $region49: #{tpu_custom_call.1} parent=43 // pred_check
        %p752 = pneg %p152
      $region50: #{tpu_custom_call.1} parent=43 // pred_check_branch
        %754 = sbr.rel (%p752) target = $region52
      $region51: #{tpu_custom_call.1} parent=43 // pred_region
        %s755 = smul.u32 16, %s23
        %p756 = scmp.lt.s32.totalorder %s22, 1
        %s757 = scalar_select %p756, %s22, 1
        %p758 = scmp.lt.s32.totalorder %s755, 15
        %s759 = scalar_select %p758, %s755, 15
        %s760 = smul.addr %s757, 16
        %s761 = sadd.s32 %s759, %s760
        %s762 = smul.addr %s761, 8
        %s763 = scalar_lea.vmem %s4, %s762
      $region52: #{tpu_custom_call.1} parent=43 // pred_fallthru
        _
    $region44: #{tpu_custom_call.1} parent=5 // pred_fallthru
      _
  $region6: #{tpu_custom_call.1} parent=0 // loop_footer
    %s15 = sadd.s32 1, %s11
  $region7: #{tpu_custom_call.1} parent=0 // loop_footer_branch
    %10 = sbr.rel target = $region3
  $region8: #{tpu_custom_call.1} parent=0 // loop_exit
    _

</llo_original>
